<compile_context>
chip_gen: v7x
topology: tpu7x:2x2x1
jax: 0.10.0
libtpu: 0.0.40
codegen_flags: <defaults>
</compile_context>

<pallas_src>
import functools

import jax
import jax.numpy as jnp
from jax.experimental import pallas as pl
from jax.experimental.pallas import tpu as pltpu


def _round_up(x, m):
    return (x + m - 1) // m * m


def conv2d_bn_relu(x, weight, gamma, beta, running_mean, running_var,
                   *, stride=1, padding=0, eps=1e-5,
                   compute_dtype=jnp.float32, out_dtype=jnp.float32,
                   lane_tile=2048):
    """x: [N, C, H, W], weight: [OC, C, KH, KW] -> [N, OC, OH, OW]."""
    N, C, H, W = x.shape
    OC, _, KH, KW = weight.shape
    Hp, Wp = H + 2 * padding, W + 2 * padding
    OH = (Hp - KH) // stride + 1
    OW = (Wp - KW) // stride + 1
    OHd = Hp - KH + 1                        # dense (stride-1) output rows
    L_dense = OHd * Wp                       # dense row-major output length

    # ---- geometry: sublane padding, lane blocks, slab padding -------------
    C_k = _round_up(C, 8)                    # channels on sublanes
    OC_k = _round_up(OC, 8)                  # out-channels on sublanes
    acc_budget = 32 * 1024                   # keep f32 acc ~<= half vreg file
    cap = max(128, min(_round_up(lane_tile, 128),
                       (acc_budget // OC_k) // 128 * 128))
    L_tile = min(_round_up(L_dense, 128), cap)      # 128-multiple lane block
    n_lb = pl.cdiv(L_dense, L_tile)          # output lane blocks per image
    L_out = n_lb * L_tile
    max_off = (KH - 1) * Wp + (KW - 1)       # largest static tap shift
    Lp_in = _round_up(L_out + max_off, 128)  # padded slab lane length (>= any tap end)

    # ---- fold eval-mode BN into conv weights (y = conv*scale + bias) ------
    scale = gamma / jnp.sqrt(running_var + eps)                     # (OC,)
    bias = (beta - running_mean * scale).astype(jnp.float32)
    bias = jnp.pad(bias, (0, OC_k - OC)).reshape(OC_k, 1)
    w_f = (weight * scale[:, None, None, None]).astype(compute_dtype)
    w_f = jnp.pad(w_f, ((0, OC_k - OC), (0, C_k - C), (0, 0), (0, 0)))

    KKC = KH * KW * C_k
    fuse_taps = C_k < 64                     # shallow K: fuse taps into one matmul
    if fuse_taps:
        # column order (kh, kw, c) matches the staging layout in the kernel
        w_mat = w_f.transpose(0, 2, 3, 1).reshape(OC_k, KKC)
    else:
        # tap-major table: w_mat[kh*KW + kw] = scaled W[:, :, kh, kw]
        w_mat = w_f.transpose(2, 3, 0, 1).reshape(KH * KW, OC_k, C_k)

    # ---- padded input slab: (N, C_k, Lp_in), all padding is zeros ---------
    xp = jnp.pad(x.astype(compute_dtype),
                 ((0, 0), (0, C_k - C), (padding, padding), (padding, padding)))
    x_flat = xp.reshape(N, C_k, Hp * Wp)
    x_flat = jnp.pad(x_flat, ((0, 0), (0, 0), (0, Lp_in - Hp * Wp)))

    # ---- kernels -----------------------------------------------------------
    def tap_slice(x_ref, off):
        # Slice the ref (not a materialized value) so Mosaic can issue shifted
        # loads instead of re-tiled VMEM copies of the whole slab.
        if n_lb == 1:
            return x_ref[0, :, off:off + L_tile]          # fully static slice
        base = pl.multiple_of(pl.program_id(1) * L_tile, 128)
        return x_ref[0, :, pl.ds(base + off, L_tile)]

    def kernel_fused(x_ref, w_ref, b_ref, o_ref, stg_ref):
        # Stage the KH*KW shifted taps with aligned 8-sublane stores ...
        for kh in range(KH):
            for kw in range(KW):
                t = kh * KW + kw
                stg_ref[t * C_k:(t + 1) * C_k, :] = tap_slice(x_ref, kh * Wp + kw)
        # ... and contract them in a single matmul (K = KH*KW*C_k).
        y = jnp.dot(w_ref[...], stg_ref[...],
                    preferred_element_type=jnp.float32)
        y = y + b_ref[...]                                # (OC_k,1) lane bcast
        o_ref[0] = jnp.maximum(y, 0.0).astype(o_ref.dtype)

    def kernel_taps(x_ref, w_ref, b_ref, o_ref):
        acc = jnp.zeros((OC_k, L_tile), jnp.float32)      # vreg accumulator
        for kh in range(KH):
            for kw in range(KW):
                acc = acc + jnp.dot(w_ref[kh * KW + kw],              # (OC_k, C_k)
                                    tap_slice(x_ref, kh * Wp + kw),   # (C_k, L_tile)
                                    preferred_element_type=jnp.float32)
        y = acc + b_ref[...]
        o_ref[0] = jnp.maximum(y, 0.0).astype(o_ref.dtype)

    if fuse_taps:
        kernel = kernel_fused
        w_spec = pl.BlockSpec((OC_k, KKC), lambda n, lb: (0, 0))
        scratch_shapes = [pltpu.VMEM((KKC, L_tile), compute_dtype)]
    else:
        kernel = kernel_taps
        w_spec = pl.BlockSpec((KH * KW, OC_k, C_k), lambda n, lb: (0, 0, 0))
        scratch_shapes = []

    # VMEM budget from the actual blocks (2x for double buffering) so the same
    # code picks a limit that also fits v7x's 64 MiB physical VMEM.
    itm = jnp.dtype(compute_dtype).itemsize
    est = (2 * C_k * Lp_in * itm                                   # input slab
           + 2 * OC_k * L_tile * jnp.dtype(out_dtype).itemsize     # output block
           + 2 * w_mat.size * itm + 2 * OC_k * 4)                  # weights + bias
    if fuse_taps:
        est += KKC * L_tile * itm
    vmem_limit = int(min(100 * 2**20, max(2 * est + 2 * 2**20, 16 * 2**20)))

    out = pl.pallas_call(
        kernel,
        out_shape=jax.ShapeDtypeStruct((N, OC_k, L_out), out_dtype),
        grid_spec=pltpu.PrefetchScalarGridSpec(
            num_scalar_prefetch=0,
            grid=(N, n_lb),
            in_specs=[
                # one image slab; index_map constant over lb -> resident
                pl.BlockSpec((1, C_k, Lp_in), lambda n, lb: (n, 0, 0)),
                w_spec,                                            # weights (resident)
                pl.BlockSpec((OC_k, 1), lambda n, lb: (0, 0)),     # BN bias (resident)
            ],
            out_specs=pl.BlockSpec((1, OC_k, L_tile),
                                   lambda n, lb: (n, 0, lb)),      # lane-dense blocks
            scratch_shapes=scratch_shapes,
        ),
        compiler_params=pltpu.CompilerParams(
            dimension_semantics=("parallel", "parallel"),
            vmem_limit_bytes=vmem_limit),
    )(x_flat, w_mat, bias)

    # Channel-major already: drop pad channels/lanes, reshape, subsample
    # stride, drop the KW-1 wrap-around columns.
    out = out[:, :OC, :L_dense].reshape(N, OC, OHd, Wp)
    out = out[:, :, ::stride, ::stride][:, :, :OH, :OW]
    return out


def _reference(x, weight, gamma, beta, running_mean, running_var,
               *, stride, padding, eps=1e-5):
    y = jax.lax.conv_general_dilated(
        x, weight, (stride, stride),
        ((padding, padding), (padding, padding)),
        dimension_numbers=("NCHW", "OIHW", "NCHW"))
    scale = gamma / jnp.sqrt(running_var + eps)
    bias = beta - running_mean * scale
    y = y * scale[None, :, None, None] + bias[None, :, None, None]
    return jnp.maximum(y, 0.0)


if __name__ == "__main__":
    # Conv2dReLU(in_channels=4, out_channels=8, kernel_size=3, padding=1,
    #            stride=1, use_batchnorm=True)  -> conv has no bias.
    N, C, H, W = 2, 4, 16, 16
    OC, KH, KW = 8, 3, 3
    stride, padding = 1, 1

    key = jax.random.PRNGKey(0)
    kx, kw, kg, kb, km, kv = jax.random.split(key, 6)
    x = jax.random.normal(kx, (N, C, H, W), dtype=jnp.float32)
    weight = 0.1 * jax.random.normal(kw, (OC, C, KH, KW), dtype=jnp.float32)
    gamma = 1.0 + 0.1 * jax.random.normal(kg, (OC,), dtype=jnp.float32)
    beta = 0.1 * jax.random.normal(kb, (OC,), dtype=jnp.float32)
    running_mean = 0.1 * jax.random.normal(km, (OC,), dtype=jnp.float32)
    running_var = jnp.abs(jax.random.normal(kv, (OC,), dtype=jnp.float32)) + 0.5

    fwd = jax.jit(functools.partial(conv2d_bn_relu, stride=stride, padding=padding))
    out = fwd(x, weight, gamma, beta, running_mean, running_var)
    out = jax.block_until_ready(out)

    ref = _reference(x, weight, gamma, beta, running_mean, running_var,
                     stride=stride, padding=padding)
    assert out.shape == (N, OC, H, W), out.shape
    assert jnp.allclose(out, ref, atol=1e-4, rtol=1e-4), "mismatch vs reference"

    print("KERNEL_OK")
</pallas_src>

<mosaic_0001>
module attributes {stable_mosaic.version = 11 : i64} {
  func.func @kernel_fused(%arg0: i32, %arg1: i32, %arg2: memref<1x8x512xf32, #tpu.memory_space<vmem>>, %arg3: memref<8x72xf32, #tpu.memory_space<vmem>>, %arg4: memref<8x1xf32, #tpu.memory_space<vmem>>, %arg5: memref<1x8x384xf32, #tpu.memory_space<vmem>>, %arg6: memref<72x384xf32, #tpu.memory_space<vmem>>) attributes {dimension_semantics = [#tpu.dimension_semantics<parallel>, #tpu.dimension_semantics<parallel>], iteration_bounds = array<i64: 2, 1>, scalar_prefetch = 0 : i64, scratch_operands = 1 : i64, tpu.core_type = #tpu.core_type<tc>, window_params = [{transform_indices = @transform_0, window_bounds = array<i64: 1, 8, 512>}, {pipeline_mode = #tpu.pipeline_mode<synchronous>, transform_indices = @transform_1, window_bounds = array<i64: 8, 72>}, {pipeline_mode = #tpu.pipeline_mode<synchronous>, transform_indices = @transform_2, window_bounds = array<i64: 8, 1>}, {transform_indices = @transform_3, window_bounds = array<i64: 1, 8, 384>}]} {
    %c0 = arith.constant 0 : index
    %c0_0 = arith.constant 0 : index
    %c0_1 = arith.constant 0 : index
    %0 = vector.load %arg2[%c0, %c0_0, %c0_1] : memref<1x8x512xf32, #tpu.memory_space<vmem>>, vector<1x8x384xf32>
    %1 = vector.shape_cast %0 : vector<1x8x384xf32> to vector<8x384xf32>
    %c0_2 = arith.constant 0 : index
    %c0_3 = arith.constant 0 : index
    %2 = vector.load %arg6[%c0_2, %c0_3] : memref<72x384xf32, #tpu.memory_space<vmem>>, vector<8x384xf32>
    tpu.vector_store %arg6[%c0_2, %c0_3], %1 {strides = array<i32>} : memref<72x384xf32, #tpu.memory_space<vmem>>, vector<8x384xf32>,
    %c0_4 = arith.constant 0 : index
    %c0_5 = arith.constant 0 : index
    %c1 = arith.constant 1 : index
    %3 = vector.load %arg2[%c0_4, %c0_5, %c1] : memref<1x8x512xf32, #tpu.memory_space<vmem>>, vector<1x8x384xf32>
    %4 = vector.shape_cast %3 : vector<1x8x384xf32> to vector<8x384xf32>
    %c8 = arith.constant 8 : index
    %c0_6 = arith.constant 0 : index
    %5 = vector.load %arg6[%c8, %c0_6] : memref<72x384xf32, #tpu.memory_space<vmem>>, vector<8x384xf32>
    tpu.vector_store %arg6[%c8, %c0_6], %4 {strides = array<i32>} : memref<72x384xf32, #tpu.memory_space<vmem>>, vector<8x384xf32>,
    %c0_7 = arith.constant 0 : index
    %c0_8 = arith.constant 0 : index
    %c2 = arith.constant 2 : index
    %6 = vector.load %arg2[%c0_7, %c0_8, %c2] : memref<1x8x512xf32, #tpu.memory_space<vmem>>, vector<1x8x384xf32>
    %7 = vector.shape_cast %6 : vector<1x8x384xf32> to vector<8x384xf32>
    %c16 = arith.constant 16 : index
    %c0_9 = arith.constant 0 : index
    %8 = vector.load %arg6[%c16, %c0_9] : memref<72x384xf32, #tpu.memory_space<vmem>>, vector<8x384xf32>
    tpu.vector_store %arg6[%c16, %c0_9], %7 {strides = array<i32>} : memref<72x384xf32, #tpu.memory_space<vmem>>, vector<8x384xf32>,
    %c0_10 = arith.constant 0 : index
    %c0_11 = arith.constant 0 : index
    %c18 = arith.constant 18 : index
    %9 = vector.load %arg2[%c0_10, %c0_11, %c18] : memref<1x8x512xf32, #tpu.memory_space<vmem>>, vector<1x8x384xf32>
    %10 = vector.shape_cast %9 : vector<1x8x384xf32> to vector<8x384xf32>
    %c24 = arith.constant 24 : index
    %c0_12 = arith.constant 0 : index
    %11 = vector.load %arg6[%c24, %c0_12] : memref<72x384xf32, #tpu.memory_space<vmem>>, vector<8x384xf32>
    tpu.vector_store %arg6[%c24, %c0_12], %10 {strides = array<i32>} : memref<72x384xf32, #tpu.memory_space<vmem>>, vector<8x384xf32>,
    %c0_13 = arith.constant 0 : index
    %c0_14 = arith.constant 0 : index
    %c19 = arith.constant 19 : index
    %12 = vector.load %arg2[%c0_13, %c0_14, %c19] : memref<1x8x512xf32, #tpu.memory_space<vmem>>, vector<1x8x384xf32>
    %13 = vector.shape_cast %12 : vector<1x8x384xf32> to vector<8x384xf32>
    %c32 = arith.constant 32 : index
    %c0_15 = arith.constant 0 : index
    %14 = vector.load %arg6[%c32, %c0_15] : memref<72x384xf32, #tpu.memory_space<vmem>>, vector<8x384xf32>
    tpu.vector_store %arg6[%c32, %c0_15], %13 {strides = array<i32>} : memref<72x384xf32, #tpu.memory_space<vmem>>, vector<8x384xf32>,
    %c0_16 = arith.constant 0 : index
    %c0_17 = arith.constant 0 : index
    %c20 = arith.constant 20 : index
    %15 = vector.load %arg2[%c0_16, %c0_17, %c20] : memref<1x8x512xf32, #tpu.memory_space<vmem>>, vector<1x8x384xf32>
    %16 = vector.shape_cast %15 : vector<1x8x384xf32> to vector<8x384xf32>
    %c40 = arith.constant 40 : index
    %c0_18 = arith.constant 0 : index
    %17 = vector.load %arg6[%c40, %c0_18] : memref<72x384xf32, #tpu.memory_space<vmem>>, vector<8x384xf32>
    tpu.vector_store %arg6[%c40, %c0_18], %16 {strides = array<i32>} : memref<72x384xf32, #tpu.memory_space<vmem>>, vector<8x384xf32>,
    %c0_19 = arith.constant 0 : index
    %c0_20 = arith.constant 0 : index
    %c36 = arith.constant 36 : index
    %18 = vector.load %arg2[%c0_19, %c0_20, %c36] : memref<1x8x512xf32, #tpu.memory_space<vmem>>, vector<1x8x384xf32>
    %19 = vector.shape_cast %18 : vector<1x8x384xf32> to vector<8x384xf32>
    %c48 = arith.constant 48 : index
    %c0_21 = arith.constant 0 : index
    %20 = vector.load %arg6[%c48, %c0_21] : memref<72x384xf32, #tpu.memory_space<vmem>>, vector<8x384xf32>
    tpu.vector_store %arg6[%c48, %c0_21], %19 {strides = array<i32>} : memref<72x384xf32, #tpu.memory_space<vmem>>, vector<8x384xf32>,
    %c0_22 = arith.constant 0 : index
    %c0_23 = arith.constant 0 : index
    %c37 = arith.constant 37 : index
    %21 = vector.load %arg2[%c0_22, %c0_23, %c37] : memref<1x8x512xf32, #tpu.memory_space<vmem>>, vector<1x8x384xf32>
    %22 = vector.shape_cast %21 : vector<1x8x384xf32> to vector<8x384xf32>
    %c56 = arith.constant 56 : index
    %c0_24 = arith.constant 0 : index
    %23 = vector.load %arg6[%c56, %c0_24] : memref<72x384xf32, #tpu.memory_space<vmem>>, vector<8x384xf32>
    tpu.vector_store %arg6[%c56, %c0_24], %22 {strides = array<i32>} : memref<72x384xf32, #tpu.memory_space<vmem>>, vector<8x384xf32>,
    %c0_25 = arith.constant 0 : index
    %c0_26 = arith.constant 0 : index
    %c38 = arith.constant 38 : index
    %24 = vector.load %arg2[%c0_25, %c0_26, %c38] : memref<1x8x512xf32, #tpu.memory_space<vmem>>, vector<1x8x384xf32>
    %25 = vector.shape_cast %24 : vector<1x8x384xf32> to vector<8x384xf32>
    %c64 = arith.constant 64 : index
    %c0_27 = arith.constant 0 : index
    %26 = vector.load %arg6[%c64, %c0_27] : memref<72x384xf32, #tpu.memory_space<vmem>>, vector<8x384xf32>
    tpu.vector_store %arg6[%c64, %c0_27], %25 {strides = array<i32>} : memref<72x384xf32, #tpu.memory_space<vmem>>, vector<8x384xf32>,
    %c0_28 = arith.constant 0 : index
    %c0_29 = arith.constant 0 : index
    %27 = vector.load %arg3[%c0_28, %c0_29] : memref<8x72xf32, #tpu.memory_space<vmem>>, vector<8x72xf32>
    %c0_30 = arith.constant 0 : index
    %c0_31 = arith.constant 0 : index
    %28 = vector.load %arg6[%c0_30, %c0_31] : memref<72x384xf32, #tpu.memory_space<vmem>>, vector<72x384xf32>
    %cst = arith.constant dense<0.000000e+00> : vector<8x384xf32>
    %29 = tpu.matmul %27, %28, %cst {dimension_numbers = #tpu.dot_dimension_numbers<[1], [0], [0], [1], [0, 0, 1, 1], [], []>} : vector<8x72xf32>, vector<72x384xf32>, vector<8x384xf32> -> vector<8x384xf32>
    %c0_32 = arith.constant 0 : index
    %c0_33 = arith.constant 0 : index
    %30 = vector.load %arg4[%c0_32, %c0_33] : memref<8x1xf32, #tpu.memory_space<vmem>>, vector<8x1xf32>
    %31 = vector.broadcast %30 : vector<8x1xf32> to vector<8x384xf32>
    %32 = arith.addf %29, %31 : vector<8x384xf32>
    %cst_34 = arith.constant 0.000000e+00 : f32
    %33 = vector.broadcast %cst_34 : f32 to vector<8x384xf32>
    %34 = arith.maximumf %32, %33 : vector<8x384xf32>
    %c0_35 = arith.constant 0 : index
    %c0_36 = arith.constant 0 : index
    %c0_37 = arith.constant 0 : index
    %35 = vector.load %arg5[%c0_35, %c0_36, %c0_37] : memref<1x8x384xf32, #tpu.memory_space<vmem>>, vector<1x8x384xf32>
    %36 = vector.shape_cast %35 : vector<1x8x384xf32> to vector<8x384xf32>
    %37 = vector.shape_cast %34 : vector<8x384xf32> to vector<1x8x384xf32>
    tpu.vector_store %arg5[%c0_35, %c0_36, %c0_37], %37 {strides = array<i32>} : memref<1x8x384xf32, #tpu.memory_space<vmem>>, vector<1x8x384xf32>,
    return
  }
  func.func @transform_0(%arg0: i32, %arg1: i32) -> (i32, i32, i32) {
    %c0_i32 = arith.constant 0 : i32
    %c0_i32_0 = arith.constant 0 : i32
    %c0_i32_1 = arith.constant 0 : i32
    return %arg0, %c0_i32, %c0_i32_0 : i32, i32, i32
  }
  func.func @transform_1(%arg0: i32, %arg1: i32) -> (i32, i32) {
    %c0_i32 = arith.constant 0 : i32
    %c0_i32_0 = arith.constant 0 : i32
    %c0_i32_1 = arith.constant 0 : i32
    return %c0_i32, %c0_i32_0 : i32, i32
  }
  func.func @transform_2(%arg0: i32, %arg1: i32) -> (i32, i32) {
    %c0_i32 = arith.constant 0 : i32
    %c0_i32_0 = arith.constant 0 : i32
    %c0_i32_1 = arith.constant 0 : i32
    return %c0_i32, %c0_i32_0 : i32, i32
  }
  func.func @transform_3(%arg0: i32, %arg1: i32) -> (i32, i32, i32) {
    %c0_i32 = arith.constant 0 : i32
    %c0_i32_0 = arith.constant 0 : i32
    return %arg0, %c0_i32, %arg1 : i32, i32, i32
  }
}

</mosaic_0001>

<llo_original>
// kernel: conv2d_bn_relu.1
$region0: #{conv2d_bn_relu.1}
  #allocation0 [shape = 'u32[]', space=smem, size = 0x4, offset = 0x4, fixed_abs, tag = 'smem constant byte address 0x4 - core index']
  #allocation1 [shape = 'u32[144,128]{1,0:T(1,128)}', space=vmem, size = 0x12000, scoped, tag = 'internal scratch']
  #allocation2 [shape = 'f32[72,384]{1,0:T(8,128)}', space=vmem, size = 0x1b000, scoped, tag = 'scratch operand']
  %s0 = inlined_call_operand.vmem [shape: f32[2,8,512], index: 0, kind: input, shape index: {}]
  %s1 = inlined_call_operand.vmem [shape: f32[8,72], index: 1, kind: input, shape index: {}]
  %s2 = inlined_call_operand.vmem [shape: f32[8,1], index: 2, kind: input, shape index: {}]
  %s3 = inlined_call_operand.vmem [shape: f32[2,8,384], index: 3, kind: output, shape index: {}]
  %s4 = sld [smem:[#allocation0]]
  $region45: #{conv2d_bn_relu.1} parent=0
    _
  %s6 = ssub.s32 1, %s4
  %s7 = scalar_select 0, %s6, %s4
  loop: start=0, step=1, limit=4
  $region2: #{conv2d_bn_relu.1} parent=0 // loop_pre_header
    _
  $region3: #{conv2d_bn_relu.1} parent=0 // loop_header
    %s9 = sphi 0, %s13
    %p10 = scmp.ge.s32.totalorder %s9, 4
    %s16 = sphi 0, %s28
    %s17 = sphi 0, %s24
    %s18 = sphi 0, %s16
    %s19 = sphi 0, %s17
    %s20 = sphi 0, %s18
    %s21 = sphi 0, %s19
    %s31 = sphi 0, %s33
    %s34 = sphi 0, %s31
    %s35 = sphi 0, %s34
    %s51 = sphi 0, %s35
    %s55 = sphi 0, %s55
    %s57 = sphi 0, %s55
    %s58 = sphi 0, %s57
    %s72 = sphi 0, %s58
    %s76 = sphi 0, %s76
    %s78 = sphi 0, %s76
    %s79 = sphi 0, %s78
    %s93 = sphi 0, %s79
    %s101 = sphi 0, %s103
    %s104 = sphi 0, %s101
    %s105 = sphi 0, %s104
    %s121 = sphi 0, %s105
  $region4: #{conv2d_bn_relu.1} parent=0 // loop_header_branch
    %12 = sbr.rel (%p10) target = $region8
  $region5: #{conv2d_bn_relu.1} parent=0 // loop_body
    %s14 = ssub.s32 %s9, 1
    %s15 = ssub.s32 %s9, 2
    %s22 = sadd.s32 1, %s17
    %p23 = scmp.ge.s32.totalorder %s22, 1
    %s24 = scalar_select %p23, 0, %s22
    %s25 = sadd.s32 1, %s16
    %s26 = scalar_select %p23, %s25, %s16
    %p27 = scmp.ge.s32.totalorder %s26, 2
    %s28 = scalar_select %p27, 0, %s26
    %s29 = ssub.s32 %s16, %s28
    %p30 = scmp.eq.s32.totalorder %s29, 0
    %s32 = sadd.s32 %s31, 1
    %s33 = scalar_select %p30, %s31, %s32
    %p36 = pneg %p30
    %p37 = scmp.eq.s32.totalorder %s9, 1
    %p38 = por %p36, %p37
    %p39 = scmp.ne.s32.totalorder %s31, %s34
    %p40 = scmp.eq.s32.totalorder %s9, 0
    %p41 = por %p39, %p40
    %p42 = scmp.ne.s32.totalorder %s31, %s34
    %p43 = scmp.eq.s32.totalorder %s14, 1
    %p44 = por %p42, %p43
    %p45 = scmp.ne.s32.totalorder %s34, %s35
    %p46 = scmp.eq.s32.totalorder %s14, 0
    %p47 = por %p45, %p46
    %p48 = scmp.ne.s32.totalorder %s34, %s35
    %p49 = scmp.eq.s32.totalorder %s15, 1
    %p50 = por %p48, %p49
    %p52 = scmp.ne.s32.totalorder %s35, %s51
    %p53 = scmp.eq.s32.totalorder %s15, 0
    %p54 = por %p52, %p53
    %s56 = sadd.s32 %s55, 1
    %p59 = scmp.eq.s32.totalorder %s9, 1
    %p60 = scmp.ne.s32.totalorder %s55, %s57
    %p61 = scmp.eq.s32.totalorder %s9, 0
    %p62 = por %p60, %p61
    %p63 = scmp.ne.s32.totalorder %s55, %s57
    %p64 = scmp.eq.s32.totalorder %s14, 1
    %p65 = por %p63, %p64
    %p66 = scmp.ne.s32.totalorder %s57, %s58
    %p67 = scmp.eq.s32.totalorder %s14, 0
    %p68 = por %p66, %p67
    %p69 = scmp.ne.s32.totalorder %s57, %s58
    %p70 = scmp.eq.s32.totalorder %s15, 1
    %p71 = por %p69, %p70
    %p73 = scmp.ne.s32.totalorder %s58, %s72
    %p74 = scmp.eq.s32.totalorder %s15, 0
    %p75 = por %p73, %p74
    %s77 = sadd.s32 %s76, 1
    %p80 = scmp.eq.s32.totalorder %s9, 1
    %p81 = scmp.ne.s32.totalorder %s76, %s78
    %p82 = scmp.eq.s32.totalorder %s9, 0
    %p83 = por %p81, %p82
    %p84 = scmp.ne.s32.totalorder %s76, %s78
    %p85 = scmp.eq.s32.totalorder %s14, 1
    %p86 = por %p84, %p85
    %p87 = scmp.ne.s32.totalorder %s78, %s79
    %p88 = scmp.eq.s32.totalorder %s14, 0
    %p89 = por %p87, %p88
    %p90 = scmp.ne.s32.totalorder %s78, %s79
    %p91 = scmp.eq.s32.totalorder %s15, 1
    %p92 = por %p90, %p91
    %p94 = scmp.ne.s32.totalorder %s79, %s93
    %p95 = scmp.eq.s32.totalorder %s15, 0
    %p96 = por %p94, %p95
    %s97 = ssub.s32 %s16, %s28
    %s98 = ssub.s32 %s17, %s24
    %s99 = sor.u32 %s97, %s98
    %p100 = scmp.eq.s32.totalorder %s99, 0
    %s102 = sadd.s32 %s101, 1
    %s103 = scalar_select %p100, %s101, %s102
    %p106 = pneg %p100
    %p107 = scmp.eq.s32.totalorder %s9, 1
    %p108 = por %p106, %p107
    %p109 = scmp.ne.s32.totalorder %s101, %s104
    %p110 = scmp.eq.s32.totalorder %s9, 0
    %p111 = por %p109, %p110
    %p112 = scmp.ne.s32.totalorder %s101, %s104
    %p113 = scmp.eq.s32.totalorder %s14, 1
    %p114 = por %p112, %p113
    %p115 = scmp.ne.s32.totalorder %s104, %s105
    %p116 = scmp.eq.s32.totalorder %s14, 0
    %p117 = por %p115, %p116
    %p118 = scmp.ne.s32.totalorder %s104, %s105
    %p119 = scmp.eq.s32.totalorder %s15, 1
    %p120 = por %p118, %p119
    %p122 = scmp.ne.s32.totalorder %s105, %s121
    %p123 = scmp.eq.s32.totalorder %s15, 0
    %p124 = por %p122, %p123
    %p125 = scmp.le.s32.totalorder 1, %s9
    %p126 = scmp.lt.s32.totalorder %s9, 3
    %p127 = pnand %p125, %p126
    %p128 = pneg %p127
    // Predicated region
    $region9: #{conv2d_bn_relu.1} parent=5 // pred_check
      _
    $region10: #{conv2d_bn_relu.1} parent=5 // pred_check_branch
      %130 = sbr.rel (%p127) target = $region12
    $region11: #{conv2d_bn_relu.1} parent=5 // pred_region
      %s131 = ssub.s32 %s9, 1
      // Predicated region
      $region13: #{conv2d_bn_relu.1} parent=11 // pred_check
        %p132 = pneg %p68
      $region14: #{conv2d_bn_relu.1} parent=11 // pred_check_branch
        %134 = sbr.rel (%p132) target = $region16
      $region15: #{conv2d_bn_relu.1} parent=11 // pred_region
        _
      $region16: #{conv2d_bn_relu.1} parent=11 // pred_fallthru
        _
      // Predicated region
      $region17: #{conv2d_bn_relu.1} parent=11 // pred_check
        %p135 = pneg %p89
      $region18: #{conv2d_bn_relu.1} parent=11 // pred_check_branch
        %137 = sbr.rel (%p135) target = $region20
      $region19: #{conv2d_bn_relu.1} parent=11 // pred_region
        _
      $region20: #{conv2d_bn_relu.1} parent=11 // pred_fallthru
        _
    $region12: #{conv2d_bn_relu.1} parent=5 // pred_fallthru
      _
    %p138 = scmp.lt.s32.totalorder %s9, 2
    // Predicated region
    $region21: #{conv2d_bn_relu.1} parent=5 // pred_check
      %p139 = pneg %p138
    $region22: #{conv2d_bn_relu.1} parent=5 // pred_check_branch
      %141 = sbr.rel (%p139) target = $region24
    $region23: #{conv2d_bn_relu.1} parent=5 // pred_region
      // Predicated region
      $region25: #{conv2d_bn_relu.1} parent=23 // pred_check
        %p142 = pneg %p41
      $region26: #{conv2d_bn_relu.1} parent=23 // pred_check_branch
        %144 = sbr.rel (%p142) target = $region28
      $region27: #{conv2d_bn_relu.1} parent=23 // pred_region
        %p145 = scmp.lt.s32.totalorder %s16, 1
        %s146 = scalar_select %p145, %s16, 1
        %s147 = smul.addr %s146, 4
        %s148 = smul.addr %s147, 8
        %s149 = scalar_lea.vmem %s0, %s148
      $region28: #{conv2d_bn_relu.1} parent=23 // pred_fallthru
        _
    $region24: #{conv2d_bn_relu.1} parent=5 // pred_fallthru
      _
    %p150 = scmp.le.s32.totalorder 1, %s9
    %p151 = scmp.lt.s32.totalorder %s9, 3
    %p152 = pnand %p150, %p151
    %p153 = pneg %p152
    // Predicated region
    $region29: #{conv2d_bn_relu.1} parent=5 // pred_check
      _
    $region30: #{conv2d_bn_relu.1} parent=5 // pred_check_branch
      %155 = sbr.rel (%p152) target = $region32
    $region31: #{conv2d_bn_relu.1} parent=5 // pred_region
      %s156 = ssub.s32 %s9, 1
      %p157 = scmp.lt.s32.totalorder %s18, 1
      %s158 = scalar_select %p157, %s18, 1
      %s159 = smul.addr %s158, 4
      %s160 = smul.addr %s159, 8
      %s161 = scalar_lea.vmem %s0, %s160
      %p162 = pneg %p47
      %p163 = pneg %p44
      %p164 = pneg %p68
      %p165 = pneg %p65
      %p166 = pneg %p89
      %p167 = pneg %p86
      %p168 = pneg %p117
      %p169 = pneg %p114
      %s170 = smul.u32 3, %s19
      %p171 = scmp.lt.s32.totalorder %s18, 1
      %s172 = scalar_select %p171, %s18, 1
      %p173 = scmp.lt.s32.totalorder %s170, 2
      %s174 = scalar_select %p173, %s170, 2
      %s175 = smul.addr %s172, 3
      %s176 = sadd.s32 %s174, %s175
      %s177 = smul.addr %s176, 8
      %s178 = scalar_lea.vmem %s3, %s177
      %p179 = scmp.lt.s32.totalorder %s18, 1
      %s180 = scalar_select %p179, %s18, 1
      %s181 = smul.addr %s180, 4
      %s182 = smul.addr %s181, 8
      %s183 = scalar_lea.vmem %s0, %s182
      %s184 = smul.u32 3, %s19
      %p185 = scmp.lt.s32.totalorder %s18, 1
      %s186 = scalar_select %p185, %s18, 1
      %p187 = scmp.lt.s32.totalorder %s184, 2
      %s188 = scalar_select %p187, %s184, 2
      %s189 = smul.addr %s186, 3
      %s190 = sadd.s32 %s188, %s189
      %s191 = smul.addr %s190, 8
      %s192 = scalar_lea.vmem %s3, %s191
      %s193 = smul.u32 3, %s19
      %v194 = vld [vmem:[%s183] sm:$0xff]
      %v195 = vld [vmem:[%s183 + $0x8] sm:$0xff]
      %v196 = vld [vmem:[%s183 + $0x10] sm:$0xff]
      %197 = vst [vmem:[#allocation2] sm:$0xff] %v194
      %198 = vst [vmem:[#allocation2 + $0x8] sm:$0xff] %v195
      %199 = vst [vmem:[#allocation2 + $0x10] sm:$0xff] %v196
      %v200 = vld [vmem:[%s183] sm:$0xff]
      %v201 = vld [vmem:[%s183 + $0x8] sm:$0xff]
      %v202 = vld [vmem:[%s183 + $0x10] sm:$0xff]
      %v203 = vld [vmem:[%s183 + $0x18] sm:$0xff]
      %208 = vrot.lane.b32.xlu0 %v200, 127
      %v209 = vpop.permute.xlu0 %208
      %210 = vrot.lane.b32.xlu0 %v201, 127
      %v211 = vpop.permute.xlu0 %210
      %212 = vrot.lane.b32.xlu0 %v202, 127
      %v213 = vpop.permute.xlu0 %212
      %214 = vrot.lane.b32.xlu0 %v203, 127
      %v215 = vpop.permute.xlu0 %214
      %vm216 = vcmask 1039360
      %v217 = vsel %vm216, %v209, %v211
      %v218 = vsel %vm216, %v211, %v213
      %v219 = vsel %vm216, %v213, %v215
      %223 = vst [vmem:[#allocation2 + $0x18] sm:$0xff] %v217
      %224 = vst [vmem:[#allocation2 + $0x20] sm:$0xff] %v218
      %225 = vst [vmem:[#allocation2 + $0x28] sm:$0xff] %v219
      %v226 = vld [vmem:[%s183] sm:$0xff]
      %v227 = vld [vmem:[%s183 + $0x8] sm:$0xff]
      %v228 = vld [vmem:[%s183 + $0x10] sm:$0xff]
      %v229 = vld [vmem:[%s183 + $0x18] sm:$0xff]
      %234 = vrot.lane.b32.xlu0 %v226, 126
      %v235 = vpop.permute.xlu0 %234
      %236 = vrot.lane.b32.xlu0 %v227, 126
      %v237 = vpop.permute.xlu0 %236
      %238 = vrot.lane.b32.xlu0 %v228, 126
      %v239 = vpop.permute.xlu0 %238
      %240 = vrot.lane.b32.xlu0 %v229, 126
      %v241 = vpop.permute.xlu0 %240
      %vm242 = vcmask 1031168
      %v243 = vsel %vm242, %v235, %v237
      %v244 = vsel %vm242, %v237, %v239
      %v245 = vsel %vm242, %v239, %v241
      %249 = vst [vmem:[#allocation2 + $0x30] sm:$0xff] %v243
      %250 = vst [vmem:[#allocation2 + $0x38] sm:$0xff] %v244
      %251 = vst [vmem:[#allocation2 + $0x40] sm:$0xff] %v245
      %v252 = vld [vmem:[%s183] sm:$0xff]
      %v253 = vld [vmem:[%s183 + $0x8] sm:$0xff]
      %v254 = vld [vmem:[%s183 + $0x10] sm:$0xff]
      %v255 = vld [vmem:[%s183 + $0x18] sm:$0xff]
      %260 = vrot.lane.b32.xlu0 %v252, 110
      %v261 = vpop.permute.xlu0 %260
      %262 = vrot.lane.b32.xlu0 %v253, 110
      %v263 = vpop.permute.xlu0 %262
      %264 = vrot.lane.b32.xlu0 %v254, 110
      %v265 = vpop.permute.xlu0 %264
      %266 = vrot.lane.b32.xlu0 %v255, 110
      %v267 = vpop.permute.xlu0 %266
      %vm268 = vcmask 900096
      %v269 = vsel %vm268, %v261, %v263
      %v270 = vsel %vm268, %v263, %v265
      %v271 = vsel %vm268, %v265, %v267
      %275 = vst [vmem:[#allocation2 + $0x48] sm:$0xff] %v269
      %276 = vst [vmem:[#allocation2 + $0x50] sm:$0xff] %v270
      %277 = vst [vmem:[#allocation2 + $0x58] sm:$0xff] %v271
      %v278 = vld [vmem:[%s183] sm:$0xff]
      %v279 = vld [vmem:[%s183 + $0x8] sm:$0xff]
      %v280 = vld [vmem:[%s183 + $0x10] sm:$0xff]
      %v281 = vld [vmem:[%s183 + $0x18] sm:$0xff]
      %286 = vrot.lane.b32.xlu0 %v278, 109
      %v287 = vpop.permute.xlu0 %286
      %288 = vrot.lane.b32.xlu0 %v279, 109
      %v289 = vpop.permute.xlu0 %288
      %290 = vrot.lane.b32.xlu0 %v280, 109
      %v291 = vpop.permute.xlu0 %290
      %292 = vrot.lane.b32.xlu0 %v281, 109
      %v293 = vpop.permute.xlu0 %292
      %vm294 = vcmask 891904
      %v295 = vsel %vm294, %v287, %v289
      %v296 = vsel %vm294, %v289, %v291
      %v297 = vsel %vm294, %v291, %v293
      %301 = vst [vmem:[#allocation2 + $0x60] sm:$0xff] %v295
      %302 = vst [vmem:[#allocation2 + $0x68] sm:$0xff] %v296
      %303 = vst [vmem:[#allocation2 + $0x70] sm:$0xff] %v297
      %v304 = vld [vmem:[%s183] sm:$0xff]
      %v305 = vld [vmem:[%s183 + $0x8] sm:$0xff]
      %v306 = vld [vmem:[%s183 + $0x10] sm:$0xff]
      %v307 = vld [vmem:[%s183 + $0x18] sm:$0xff]
      %312 = vrot.lane.b32.xlu0 %v304, 108
      %v313 = vpop.permute.xlu0 %312
      %314 = vrot.lane.b32.xlu0 %v305, 108
      %v315 = vpop.permute.xlu0 %314
      %316 = vrot.lane.b32.xlu0 %v306, 108
      %v317 = vpop.permute.xlu0 %316
      %318 = vrot.lane.b32.xlu0 %v307, 108
      %v319 = vpop.permute.xlu0 %318
      %vm320 = vcmask 883712
      %v321 = vsel %vm320, %v313, %v315
      %v322 = vsel %vm320, %v315, %v317
      %v323 = vsel %vm320, %v317, %v319
      %327 = vst [vmem:[#allocation2 + $0x78] sm:$0xff] %v321
      %328 = vst [vmem:[#allocation2 + $0x80] sm:$0xff] %v322
      %329 = vst [vmem:[#allocation2 + $0x88] sm:$0xff] %v323
      %v330 = vld [vmem:[%s183] sm:$0xff]
      %v331 = vld [vmem:[%s183 + $0x8] sm:$0xff]
      %v332 = vld [vmem:[%s183 + $0x10] sm:$0xff]
      %v333 = vld [vmem:[%s183 + $0x18] sm:$0xff]
      %338 = vrot.lane.b32.xlu0 %v330, 92
      %v339 = vpop.permute.xlu0 %338
      %340 = vrot.lane.b32.xlu0 %v331, 92
      %v341 = vpop.permute.xlu0 %340
      %342 = vrot.lane.b32.xlu0 %v332, 92
      %v343 = vpop.permute.xlu0 %342
      %344 = vrot.lane.b32.xlu0 %v333, 92
      %v345 = vpop.permute.xlu0 %344
      %vm346 = vcmask 752640
      %v347 = vsel %vm346, %v339, %v341
      %v348 = vsel %vm346, %v341, %v343
      %v349 = vsel %vm346, %v343, %v345
      %353 = vst [vmem:[#allocation2 + $0x90] sm:$0xff] %v347
      %354 = vst [vmem:[#allocation2 + $0x98] sm:$0xff] %v348
      %355 = vst [vmem:[#allocation2 + $0xa0] sm:$0xff] %v349
      %v356 = vld [vmem:[%s183] sm:$0xff]
      %v357 = vld [vmem:[%s183 + $0x8] sm:$0xff]
      %v358 = vld [vmem:[%s183 + $0x10] sm:$0xff]
      %v359 = vld [vmem:[%s183 + $0x18] sm:$0xff]
      %364 = vrot.lane.b32.xlu0 %v356, 91
      %v365 = vpop.permute.xlu0 %364
      %366 = vrot.lane.b32.xlu0 %v357, 91
      %v367 = vpop.permute.xlu0 %366
      %368 = vrot.lane.b32.xlu0 %v358, 91
      %v369 = vpop.permute.xlu0 %368
      %370 = vrot.lane.b32.xlu0 %v359, 91
      %v371 = vpop.permute.xlu0 %370
      %vm372 = vcmask 744448
      %v373 = vsel %vm372, %v365, %v367
      %v374 = vsel %vm372, %v367, %v369
      %v375 = vsel %vm372, %v369, %v371
      %379 = vst [vmem:[#allocation2 + $0xa8] sm:$0xff] %v373
      %380 = vst [vmem:[#allocation2 + $0xb0] sm:$0xff] %v374
      %381 = vst [vmem:[#allocation2 + $0xb8] sm:$0xff] %v375
      %v382 = vld [vmem:[%s183] sm:$0xff]
      %v383 = vld [vmem:[%s183 + $0x8] sm:$0xff]
      %v384 = vld [vmem:[%s183 + $0x10] sm:$0xff]
      %v385 = vld [vmem:[%s183 + $0x18] sm:$0xff]
      %390 = vrot.lane.b32.xlu0 %v382, 90
      %v391 = vpop.permute.xlu0 %390
      %392 = vrot.lane.b32.xlu0 %v383, 90
      %v393 = vpop.permute.xlu0 %392
      %394 = vrot.lane.b32.xlu0 %v384, 90
      %v395 = vpop.permute.xlu0 %394
      %396 = vrot.lane.b32.xlu0 %v385, 90
      %v397 = vpop.permute.xlu0 %396
      %vm398 = vcmask 736256
      %v399 = vsel %vm398, %v391, %v393
      %v400 = vsel %vm398, %v393, %v395
      %v401 = vsel %vm398, %v395, %v397
      %405 = vst [vmem:[#allocation2 + $0xc0] sm:$0xff] %v399
      %406 = vst [vmem:[#allocation2 + $0xc8] sm:$0xff] %v400
      %407 = vst [vmem:[#allocation2 + $0xd0] sm:$0xff] %v401
      %v408 = vld [vmem:[%s1] sm:$0xff]
      %v409 = vld [vmem:[#allocation2] sm:$0xff]
      %v410 = vld [vmem:[#allocation2 + $0x8] sm:$0xff]
      %v411 = vld [vmem:[#allocation2 + $0x10] sm:$0xff]
      %v412 = vld [vmem:[#allocation2 + $0x18] sm:$0xff]
      %v413 = vld [vmem:[#allocation2 + $0x20] sm:$0xff]
      %v414 = vld [vmem:[#allocation2 + $0x28] sm:$0xff]
      %v415 = vld [vmem:[#allocation2 + $0x30] sm:$0xff]
      %v416 = vld [vmem:[#allocation2 + $0x38] sm:$0xff]
      %v417 = vld [vmem:[#allocation2 + $0x40] sm:$0xff]
      %v418 = vld [vmem:[#allocation2 + $0x48] sm:$0xff]
      %v419 = vld [vmem:[#allocation2 + $0x50] sm:$0xff]
      %v420 = vld [vmem:[#allocation2 + $0x58] sm:$0xff]
      %v421 = vld [vmem:[#allocation2 + $0x60] sm:$0xff]
      %v422 = vld [vmem:[#allocation2 + $0x68] sm:$0xff]
      %v423 = vld [vmem:[#allocation2 + $0x70] sm:$0xff]
      %v424 = vld [vmem:[#allocation2 + $0x78] sm:$0xff]
      %v425 = vld [vmem:[#allocation2 + $0x80] sm:$0xff]
      %v426 = vld [vmem:[#allocation2 + $0x88] sm:$0xff]
      %v427 = vld [vmem:[#allocation2 + $0x90] sm:$0xff]
      %v428 = vld [vmem:[#allocation2 + $0x98] sm:$0xff]
      %v429 = vld [vmem:[#allocation2 + $0xa0] sm:$0xff]
      %v430 = vld [vmem:[#allocation2 + $0xa8] sm:$0xff]
      %v431 = vld [vmem:[#allocation2 + $0xb0] sm:$0xff]
      %v432 = vld [vmem:[#allocation2 + $0xb8] sm:$0xff]
      %v433 = vld [vmem:[#allocation2 + $0xc0] sm:$0xff]
      %v434 = vld [vmem:[#allocation2 + $0xc8] sm:$0xff]
      %v435 = vld [vmem:[#allocation2 + $0xd0] sm:$0xff]
      %v436 = vld [vmem:[%s2] sm:$0xff]
      %438 = vset.pattern.permute.xlu0 0
      %439 = vperm.xlu0 %438, %v436
      %v440 = vpop.permute.xlu0 %439
      %vm442 = vcmask 588800
      %v444 = vsel %vm442, %v408, 0
      %446 = vmatprep.subr.mxu0 %v410
      %447 = vmatpush1.msra.mxu0 %v409
      %448 = vmatprep.subr.mxu0 %v413
      %449 = vmatpush1.msra.mxu0 %v412
      %450 = vmatprep.subr.mxu0 %v416
      %451 = vmatpush1.msra.mxu0 %v415
      %452 = vmatprep.subr.mxu0 %v419
      %453 = vmatpush1.msra.mxu0 %v418
      %454 = vmatprep.subr.mxu0 %v422
      %455 = vmatpush1.msra.mxu0 %v421
      %456 = vmatprep.subr.mxu0 %v425
      %457 = vmatpush1.msra.mxu0 %v424
      %458 = vmatprep.subr.mxu0 %v428
      %459 = vmatpush1.msra.mxu0 %v427
      %460 = vmatprep.subr.mxu0 %v431
      %461 = vmatpush1.msra.mxu0 %v430
      %462 = vmatprep.subr.mxu0 %v434
      %463 = vmatpush1.msra.mxu0 %v433
      %464 = vmatprep.subr.mxu0 0.0
      %465 = vmatpush1.msra.mxu0 0.0
      %466 = vmatprep.subr.mxu0 0.0
      %467 = vmatpush1.msra.mxu0 0.0
      %468 = vmatprep.subr.mxu0 0.0
      %469 = vmatpush1.msra.mxu0 0.0
      %470 = vmatprep.subr.mxu0 0.0
      %471 = vmatpush1.msra.mxu0 0.0
      %472 = vmatprep.subr.mxu0 0.0
      %473 = vmatpush1.msra.mxu0 0.0
      %474 = vmatprep.subr.mxu0 0.0
      %475 = vmatpush1.msra.mxu0 0.0
      %476 = vmatprep.subr.mxu0 0.0
      %477 = vmatpush1.msra.mxu0 0.0
      %478 = vmatprep.subr.mxu0 0.0
      %479 = vmatpush1.msra.mxu0 0.0
      %480 = vmatprep.subr.mxu0 0.0
      %481 = vmatpush1.msra.mxu0 0.0
      %482 = vmatprep.subr.mxu0 0.0
      %483 = vmatpush1.msra.mxu0 0.0
      %484 = vmatprep.subr.mxu0 0.0
      %485 = vmatpush1.msra.mxu0 0.0
      %486 = vmatprep.subr.mxu0 0.0
      %487 = vmatpush1.msra.mxu0 0.0
      %488 = vmatprep.subr.mxu0 0.0
      %489 = vmatpush1.msra.mxu0 0.0
      %490 = vmatprep.subr.mxu0 0.0
      %491 = vmatpush1.msra.mxu0 0.0
      %492 = vmatprep.subr.mxu0 0.0
      %493 = vmatpush1.msra.mxu0 0.0
      %494 = vmatprep.subr.mxu0 0.0
      %495 = vmatpush1.msra.mxu0 0.0
      %496 = vmatprep.subr.mxu0 0.0
      %497 = vmatpush1.msra.mxu0 0.0
      %498 = vmatprep.subr.mxu0 0.0
      %499 = vmatpush1.msra.mxu0 0.0
      %500 = vmatprep.subr.mxu0 0.0
      %501 = vmatpush1.msra.mxu0 0.0
      %502 = vmatprep.subr.mxu0 0.0
      %503 = vmatpush1.msra.mxu0 0.0
      %504 = vmatprep.subr.mxu0 0.0
      %505 = vmatpush1.msra.mxu0 0.0
      %506 = vmatprep.subr.mxu0 0.0
      %507 = vmatpush1.msra.mxu0 0.0
      %508 = vmatprep.subr.mxu0 0.0
      %509 = vmatpush1.msra.mxu0 0.0
      %510 = vmatprep.mubr.f32.mxu0 0.0
      %511 = vmatmul.mubr.f32.gmra.mrb[0].mxu0 %v444
      %v512 = vpop.f32.mrb[0].mxu0
      %v513 = vadd.f32 %v440, %v512
      %v514 = vpop.f32.mrb[0].mxu0
      %v515 = vadd.f32 %v440, %v514
      %516 = vdwg.mxu0
      %517 = vmatprep.subr.mxu0 0.0
      %518 = vmatpush1.msra.mxu0 %v411
      %519 = vmatprep.subr.mxu0 0.0
      %520 = vmatpush1.msra.mxu0 %v414
      %521 = vmatprep.subr.mxu0 0.0
      %522 = vmatpush1.msra.mxu0 %v417
      %523 = vmatprep.subr.mxu0 0.0
      %524 = vmatpush1.msra.mxu0 %v420
      %525 = vmatprep.subr.mxu0 0.0
      %526 = vmatpush1.msra.mxu0 %v423
      %527 = vmatprep.subr.mxu0 0.0
      %528 = vmatpush1.msra.mxu0 %v426
      %529 = vmatprep.subr.mxu0 0.0
      %530 = vmatpush1.msra.mxu0 %v429
      %531 = vmatprep.subr.mxu0 0.0
      %532 = vmatpush1.msra.mxu0 %v432
      %533 = vmatprep.subr.mxu0 0.0
      %534 = vmatpush1.msra.mxu0 %v435
      %535 = vmatprep.subr.mxu0 0.0
      %536 = vmatpush1.msra.mxu0 0.0
      %537 = vmatprep.subr.mxu0 0.0
      %538 = vmatpush1.msra.mxu0 0.0
      %539 = vmatprep.subr.mxu0 0.0
      %540 = vmatpush1.msra.mxu0 0.0
      %541 = vmatprep.subr.mxu0 0.0
      %542 = vmatpush1.msra.mxu0 0.0
      %543 = vmatprep.subr.mxu0 0.0
      %544 = vmatpush1.msra.mxu0 0.0
      %545 = vmatprep.subr.mxu0 0.0
      %546 = vmatpush1.msra.mxu0 0.0
      %547 = vmatprep.subr.mxu0 0.0
      %548 = vmatpush1.msra.mxu0 0.0
      %549 = vmatprep.subr.mxu0 0.0
      %550 = vmatpush1.msra.mxu0 0.0
      %551 = vmatprep.subr.mxu0 0.0
      %552 = vmatpush1.msra.mxu0 0.0
      %553 = vmatprep.subr.mxu0 0.0
      %554 = vmatpush1.msra.mxu0 0.0
      %555 = vmatprep.subr.mxu0 0.0
      %556 = vmatpush1.msra.mxu0 0.0
      %557 = vmatprep.subr.mxu0 0.0
      %558 = vmatpush1.msra.mxu0 0.0
      %559 = vmatprep.subr.mxu0 0.0
      %560 = vmatpush1.msra.mxu0 0.0
      %561 = vmatprep.subr.mxu0 0.0
      %562 = vmatpush1.msra.mxu0 0.0
      %563 = vmatprep.subr.mxu0 0.0
      %564 = vmatpush1.msra.mxu0 0.0
      %565 = vmatprep.subr.mxu0 0.0
      %566 = vmatpush1.msra.mxu0 0.0
      %567 = vmatprep.subr.mxu0 0.0
      %568 = vmatpush1.msra.mxu0 0.0
      %569 = vmatprep.subr.mxu0 0.0
      %570 = vmatpush1.msra.mxu0 0.0
      %571 = vmatprep.subr.mxu0 0.0
      %572 = vmatpush1.msra.mxu0 0.0
      %573 = vmatprep.subr.mxu0 0.0
      %574 = vmatpush1.msra.mxu0 0.0
      %575 = vmatprep.subr.mxu0 0.0
      %576 = vmatpush1.msra.mxu0 0.0
      %577 = vmatprep.subr.mxu0 0.0
      %578 = vmatpush1.msra.mxu0 0.0
      %579 = vmatprep.subr.mxu0 0.0
      %580 = vmatpush1.msra.mxu0 0.0
      %581 = vmatprep.mubr.f32.mxu0 0.0
      %582 = vmatmul.mubr.f32.gmra.mrb[0].mxu0 %v444
      %v583 = vpop.f32.mrb[0].mxu0
      %v584 = vadd.f32 %v440, %v583
      %v585 = vpop.f32.mrb[0].mxu0
      %586 = vdwg.mxu0
      %v587 = vmax.f32 %v513, 0.0
      %v588 = vmax.f32 %v515, 0.0
      %v589 = vmax.f32 %v584, 0.0
      %590 = vst [vmem:[%s192] sm:$0xff] %v587
      %591 = vst [vmem:[%s192 + $0x8] sm:$0xff] %v588
      %592 = vst [vmem:[%s192 + $0x10] sm:$0xff] %v589
      %s593 = smul.u32 3, %s19
      %p594 = scmp.lt.s32.totalorder %s18, 1
      %s595 = scalar_select %p594, %s18, 1
      %p596 = scmp.lt.s32.totalorder %s593, 2
      %s597 = scalar_select %p596, %s593, 2
      %s598 = smul.addr %s595, 3
      %s599 = sadd.s32 %s597, %s598
      %s600 = smul.addr %s599, 8
      %s601 = scalar_lea.vmem %s3, %s600
      // Predicated region
      $region33: #{conv2d_bn_relu.1} parent=31 // pred_check
        %p602 = pneg %p114
      $region34: #{conv2d_bn_relu.1} parent=31 // pred_check_branch
        %604 = sbr.rel (%p602) target = $region36
      $region35: #{conv2d_bn_relu.1} parent=31 // pred_region
        %s605 = smul.u32 3, %s19
      $region36: #{conv2d_bn_relu.1} parent=31 // pred_fallthru
        _
    $region32: #{conv2d_bn_relu.1} parent=5 // pred_fallthru
      _
    %p606 = scmp.le.s32.totalorder 2, %s9
    // Predicated region
    $region37: #{conv2d_bn_relu.1} parent=5 // pred_check
      %p607 = pneg %p606
    $region38: #{conv2d_bn_relu.1} parent=5 // pred_check_branch
      %609 = sbr.rel (%p607) target = $region40
    $region39: #{conv2d_bn_relu.1} parent=5 // pred_region
      %s610 = ssub.s32 %s9, 2
      // Predicated region
      $region41: #{conv2d_bn_relu.1} parent=39 // pred_check
        %p611 = pneg %p120
      $region42: #{conv2d_bn_relu.1} parent=39 // pred_check_branch
        %613 = sbr.rel (%p611) target = $region44
      $region43: #{conv2d_bn_relu.1} parent=39 // pred_region
        %s614 = smul.u32 3, %s21
        %p615 = scmp.lt.s32.totalorder %s20, 1
        %s616 = scalar_select %p615, %s20, 1
        %p617 = scmp.lt.s32.totalorder %s614, 2
        %s618 = scalar_select %p617, %s614, 2
        %s619 = smul.addr %s616, 3
        %s620 = sadd.s32 %s618, %s619
        %s621 = smul.addr %s620, 8
        %s622 = scalar_lea.vmem %s3, %s621
      $region44: #{conv2d_bn_relu.1} parent=39 // pred_fallthru
        _
    $region40: #{conv2d_bn_relu.1} parent=5 // pred_fallthru
      _
  $region6: #{conv2d_bn_relu.1} parent=0 // loop_footer
    %s13 = sadd.s32 1, %s9
  $region7: #{conv2d_bn_relu.1} parent=0 // loop_footer_branch
    %8 = sbr.rel target = $region3
  $region8: #{conv2d_bn_relu.1} parent=0 // loop_exit
    _

</llo_original>
